<compile_context>
chip_gen: v7x
topology: tpu7x:2x2x1
jax: 0.10.0
libtpu: 0.0.40
codegen_flags: <defaults>
</compile_context>

<pallas_src>
import functools

import jax
import jax.numpy as jnp
from jax.experimental import pallas as pl
from jax.experimental.pallas import tpu as pltpu


def _round_up(x, m):
    return (x + m - 1) // m * m


# ---------------------------------------------------------------------------
# Fused MLP kernel: out = relu(x @ W1 + b1) @ W2 + b2, all inside one step.
# ---------------------------------------------------------------------------
def _mlp_fused_kernel(x_ref, w1_ref, b1_ref, w2_ref, b2_ref, o_ref):
    # First Linear + ReLU: bf16 MXU matmul, f32 accumulate, f32 bias/ReLU.
    x = x_ref[...].astype(jnp.bfloat16)
    h = jnp.dot(x, w1_ref[...], preferred_element_type=jnp.float32)
    h = jnp.maximum(h + b1_ref[...], 0.0)
    # Second Linear (logits): hidden stays in VMEM, never touches HBM.
    o = jnp.dot(h.astype(jnp.bfloat16), w2_ref[...],
                preferred_element_type=jnp.float32)
    o_ref[...] = (o + b2_ref[...]).astype(o_ref.dtype)


def mlp_forward(params, x):
    """x: (batch, input_channel) f32 -> logits (batch, num_class) f32."""
    w1, b1, w2, b2 = params["w1"], params["b1"], params["w2"], params["b2"]
    M, K = x.shape
    K1, H = w1.shape
    H2, C = w2.shape
    assert K == K1 and H == H2

    # Tile only over the batch dim; weights are fully VMEM-resident per step.
    tm = 128 if M >= 128 else _round_up(M, 8)
    M_pad = _round_up(M, tm)
    if M_pad != M:  # single pad at the model boundary
        x = jnp.pad(x, ((0, M_pad - M), (0, 0)))

    out = pl.pallas_call(
        _mlp_fused_kernel,
        out_shape=jax.ShapeDtypeStruct((M_pad, C), jnp.float32),
        grid=(M_pad // tm,),
        in_specs=[
            pl.BlockSpec((tm, K), lambda i: (i, 0)),   # activations
            pl.BlockSpec((K, H), lambda i: (0, 0)),    # W1 (in, out), bf16
            pl.BlockSpec((1, H), lambda i: (0, 0)),    # b1, f32
            pl.BlockSpec((H, C), lambda i: (0, 0)),    # W2 (in, out), bf16
            pl.BlockSpec((1, C), lambda i: (0, 0)),    # b2, f32
        ],
        out_specs=pl.BlockSpec((tm, C), lambda i: (i, 0)),
        compiler_params=pltpu.CompilerParams(
            dimension_semantics=("parallel",)),
    )(x, w1, b1, w2, b2)

    return out[:M] if M_pad != M else out


# ---------------------------------------------------------------------------
# Parameter init (weights pre-transposed to (in, out), bf16; biases f32).
# ---------------------------------------------------------------------------
def init_params(key, input_channel, hidden_dim, num_class):
    k1, k2, k3, k4 = jax.random.split(key, 4)
    w1 = (jax.random.normal(k1, (input_channel, hidden_dim), jnp.float32)
          * (1.0 / input_channel ** 0.5)).astype(jnp.bfloat16)
    b1 = jax.random.normal(k2, (1, hidden_dim), jnp.float32) * 0.01
    w2 = (jax.random.normal(k3, (hidden_dim, num_class), jnp.float32)
          * (1.0 / hidden_dim ** 0.5)).astype(jnp.bfloat16)
    b2 = jax.random.normal(k4, (1, num_class), jnp.float32) * 0.01
    return {"w1": w1, "b1": b1, "w2": w2, "b2": b2}


def _mlp_reference(params, x):
    # Pure-JAX reference with identical bf16/f32 mixed precision.
    h = jnp.dot(x.astype(jnp.bfloat16), params["w1"],
                preferred_element_type=jnp.float32)
    h = jnp.maximum(h + params["b1"], 0.0)
    o = jnp.dot(h.astype(jnp.bfloat16), params["w2"],
                preferred_element_type=jnp.float32)
    return o + params["b2"]


if __name__ == "__main__":
    BATCH, IN_CH, HIDDEN, NUM_CLASS = 2, 64, 256, 128

    key = jax.random.PRNGKey(0)
    pkey, xkey = jax.random.split(key)
    params = init_params(pkey, IN_CH, HIDDEN, NUM_CLASS)
    x = jax.random.normal(xkey, (BATCH, IN_CH), jnp.float32)

    out = mlp_forward(params, x)
    out = jax.block_until_ready(out)

    assert out.shape == (BATCH, NUM_CLASS), out.shape
    assert bool(jnp.all(jnp.isfinite(out)))

    ref = _mlp_reference(params, x)
    assert bool(jnp.allclose(out, ref, rtol=2e-2, atol=2e-2))

    print("KERNEL_OK")
</pallas_src>

<mosaic_0001>
module attributes {stable_mosaic.version = 11 : i64} {
  func.func @_mlp_fused_kernel(%arg0: i32, %arg1: memref<8x64xf32, #tpu.memory_space<vmem>>, %arg2: memref<64x256xbf16, #tpu.memory_space<vmem>>, %arg3: memref<1x256xf32, #tpu.memory_space<vmem>>, %arg4: memref<256x128xbf16, #tpu.memory_space<vmem>>, %arg5: memref<1x128xf32, #tpu.memory_space<vmem>>, %arg6: memref<8x128xf32, #tpu.memory_space<vmem>>) attributes {dimension_semantics = [#tpu.dimension_semantics<parallel>], iteration_bounds = array<i64: 1>, scalar_prefetch = 0 : i64, scratch_operands = 0 : i64, tpu.core_type = #tpu.core_type<tc>, window_params = [{transform_indices = @transform_0, window_bounds = array<i64: 8, 64>}, {pipeline_mode = #tpu.pipeline_mode<synchronous>, transform_indices = @transform_1, window_bounds = array<i64: 64, 256>}, {pipeline_mode = #tpu.pipeline_mode<synchronous>, transform_indices = @transform_2, window_bounds = array<i64: 1, 256>}, {pipeline_mode = #tpu.pipeline_mode<synchronous>, transform_indices = @transform_3, window_bounds = array<i64: 256, 128>}, {pipeline_mode = #tpu.pipeline_mode<synchronous>, transform_indices = @transform_4, window_bounds = array<i64: 1, 128>}, {transform_indices = @transform_5, window_bounds = array<i64: 8, 128>}]} {
    %c0 = arith.constant 0 : index
    %c0_0 = arith.constant 0 : index
    %0 = vector.load %arg1[%c0, %c0_0] : memref<8x64xf32, #tpu.memory_space<vmem>>, vector<8x64xf32>
    %1 = arith.truncf %0 : vector<8x64xf32> to vector<8x64xbf16>
    %c0_1 = arith.constant 0 : index
    %c0_2 = arith.constant 0 : index
    %2 = vector.load %arg2[%c0_1, %c0_2] : memref<64x256xbf16, #tpu.memory_space<vmem>>, vector<64x256xbf16>
    %cst = arith.constant dense<0.000000e+00> : vector<8x256xf32>
    %3 = tpu.matmul %1, %2, %cst {dimension_numbers = #tpu.dot_dimension_numbers<[1], [0], [0], [1], [0, 0, 1, 1], [], []>} : vector<8x64xbf16>, vector<64x256xbf16>, vector<8x256xf32> -> vector<8x256xf32>
    %c0_3 = arith.constant 0 : index
    %c0_4 = arith.constant 0 : index
    %4 = vector.load %arg3[%c0_3, %c0_4] : memref<1x256xf32, #tpu.memory_space<vmem>>, vector<1x256xf32>
    %5 = vector.broadcast %4 : vector<1x256xf32> to vector<8x256xf32>
    %6 = arith.addf %3, %5 : vector<8x256xf32>
    %cst_5 = arith.constant 0.000000e+00 : f32
    %7 = vector.broadcast %cst_5 : f32 to vector<8x256xf32>
    %8 = arith.maximumf %6, %7 : vector<8x256xf32>
    %9 = arith.truncf %8 : vector<8x256xf32> to vector<8x256xbf16>
    %c0_6 = arith.constant 0 : index
    %c0_7 = arith.constant 0 : index
    %10 = vector.load %arg4[%c0_6, %c0_7] : memref<256x128xbf16, #tpu.memory_space<vmem>>, vector<256x128xbf16>
    %cst_8 = arith.constant dense<0.000000e+00> : vector<8x128xf32>
    %11 = tpu.matmul %9, %10, %cst_8 {dimension_numbers = #tpu.dot_dimension_numbers<[1], [0], [0], [1], [0, 0, 1, 1], [], []>} : vector<8x256xbf16>, vector<256x128xbf16>, vector<8x128xf32> -> vector<8x128xf32>
    %c0_9 = arith.constant 0 : index
    %c0_10 = arith.constant 0 : index
    %12 = vector.load %arg5[%c0_9, %c0_10] : memref<1x128xf32, #tpu.memory_space<vmem>>, vector<1x128xf32>
    %13 = vector.broadcast %12 : vector<1x128xf32> to vector<8x128xf32>
    %14 = arith.addf %11, %13 : vector<8x128xf32>
    %c0_11 = arith.constant 0 : index
    %c0_12 = arith.constant 0 : index
    %15 = vector.load %arg6[%c0_11, %c0_12] : memref<8x128xf32, #tpu.memory_space<vmem>>, vector<8x128xf32>
    tpu.vector_store %arg6[%c0_11, %c0_12], %14 {strides = array<i32>} : memref<8x128xf32, #tpu.memory_space<vmem>>, vector<8x128xf32>,
    return
  }
  func.func @transform_0(%arg0: i32) -> (i32, i32) {
    %c0_i32 = arith.constant 0 : i32
    %c0_i32_0 = arith.constant 0 : i32
    return %arg0, %c0_i32 : i32, i32
  }
  func.func @transform_1(%arg0: i32) -> (i32, i32) {
    %c0_i32 = arith.constant 0 : i32
    %c0_i32_0 = arith.constant 0 : i32
    %c0_i32_1 = arith.constant 0 : i32
    return %c0_i32, %c0_i32_0 : i32, i32
  }
  func.func @transform_2(%arg0: i32) -> (i32, i32) {
    %c0_i32 = arith.constant 0 : i32
    %c0_i32_0 = arith.constant 0 : i32
    %c0_i32_1 = arith.constant 0 : i32
    return %c0_i32, %c0_i32_0 : i32, i32
  }
  func.func @transform_3(%arg0: i32) -> (i32, i32) {
    %c0_i32 = arith.constant 0 : i32
    %c0_i32_0 = arith.constant 0 : i32
    %c0_i32_1 = arith.constant 0 : i32
    return %c0_i32, %c0_i32_0 : i32, i32
  }
  func.func @transform_4(%arg0: i32) -> (i32, i32) {
    %c0_i32 = arith.constant 0 : i32
    %c0_i32_0 = arith.constant 0 : i32
    %c0_i32_1 = arith.constant 0 : i32
    return %c0_i32, %c0_i32_0 : i32, i32
  }
  func.func @transform_5(%arg0: i32) -> (i32, i32) {
    %c0_i32 = arith.constant 0 : i32
    %c0_i32_0 = arith.constant 0 : i32
    return %arg0, %c0_i32 : i32, i32
  }
}

</mosaic_0001>

<llo_original>
// kernel: tpu_custom_call.1
$region0: #{tpu_custom_call.1}
  #allocation0 [shape = 'u32[]', space=smem, size = 0x4, offset = 0x4, fixed_abs, tag = 'smem constant byte address 0x4 - core index']
  #allocation1 [shape = 'u32[144,128]{1,0:T(1,128)}', space=vmem, size = 0x12000, scoped, tag = 'internal scratch']
  %s0 = inlined_call_operand.hbm [shape: f32[8,64], index: 0, kind: input, shape index: {}]
  %s1 = inlined_call_operand.hbm [shape: bf16[64,256], index: 1, kind: input, shape index: {}]
  %s2 = inlined_call_operand.vmem [shape: f32[1,256], index: 2, kind: input, shape index: {}]
  %s3 = inlined_call_operand.hbm [shape: bf16[256,128], index: 3, kind: input, shape index: {}]
  %s4 = inlined_call_operand.vmem [shape: f32[1,128], index: 4, kind: input, shape index: {}]
  %s5 = inlined_call_operand.hbm [shape: f32[8,128], index: 5, kind: output, shape index: {}]
  %s6 = sld [smem:[#allocation0]]
  $region42: #{tpu_custom_call.1} parent=0
    _
  %s8 = ssub.s32 1, %s6
  %s9 = scalar_select 0, %s8, %s6
  $region1: #{tpu_custom_call.1} parent=0
    #allocation2 [shape = 'u8[4096]{0}', space=vmem, size = 0x1000, scoped, tag = 'input window, operand 0, single buffered']
    #allocation3 [shape = 's32[1]{0}', space=sflag, size = 0x4, scoped, tag = 'scoped memory for tpu_custom_call.1']
    #allocation4 [shape = 's32[1]{0}', space=sflag, size = 0x4, scoped, tag = 'scoped memory for tpu_custom_call.1']
    #allocation5 [shape = 'u8[32768]{0}', space=vmem, size = 0x8000, scoped, tag = 'input window, operand 1, single buffered']
    #allocation6 [shape = 's32[1]{0}', space=sflag, size = 0x4, scoped, tag = 'scoped memory for tpu_custom_call.1']
    #allocation7 [shape = 'u8[65536]{0}', space=vmem, size = 0x10000, scoped, tag = 'input window, operand 3, single buffered']
    #allocation8 [shape = 'u8[4096]{0}', space=vmem, size = 0x1000, scoped, tag = 'output window, operand 0, single buffered']
    %10 = vsyncpa [#allocation3], 0
    %11 = vsyncpa [#allocation6], 0
    %12 = vsyncpa [#allocation4], 0
    // Predicated region
    $region2: #{tpu_custom_call.1} parent=1 // pred_check
      _
    $region3: #{tpu_custom_call.1} parent=1 // pred_check_branch
      %14 = sbr.rel (0) target = $region5
    $region4: #{tpu_custom_call.1} parent=1 // pred_region
      %s16 = ssub.s32 128, 128
      %17 = vsyncadd [#allocation3], %s16
      %s19 = sshll.u32 [#allocation2], 4
      %s20 = int_to_ptr.vmem [resolvable:$true] %s19
      %22 = dma.hbm_to_vmem [thread:$0]  %s0, 128, %s20, [#allocation3]
    $region5: #{tpu_custom_call.1} parent=1 // pred_fallthru
      _
    // Predicated region
    $region6: #{tpu_custom_call.1} parent=1 // pred_check
      _
    $region7: #{tpu_custom_call.1} parent=1 // pred_check_branch
      %24 = sbr.rel (0) target = $region9
    $region8: #{tpu_custom_call.1} parent=1 // pred_region
      %s26 = ssub.s32 1024, 1024
      %27 = vsyncadd [#allocation6], %s26
      %s28 = sshll.u32 [#allocation5], 4
      %s29 = int_to_ptr.vmem [resolvable:$true] %s28
      %34 = dma.hbm_to_vmem [thread:$0]  %s1, 1024, %s29, [#allocation6], 128, 128, 8
    $region9: #{tpu_custom_call.1} parent=1 // pred_fallthru
      _
    // Predicated region
    $region10: #{tpu_custom_call.1} parent=1 // pred_check
      _
    $region11: #{tpu_custom_call.1} parent=1 // pred_check_branch
      %36 = sbr.rel (0) target = $region13
    $region12: #{tpu_custom_call.1} parent=1 // pred_region
      _
    $region13: #{tpu_custom_call.1} parent=1 // pred_fallthru
      _
    // Predicated region
    $region14: #{tpu_custom_call.1} parent=1 // pred_check
      _
    $region15: #{tpu_custom_call.1} parent=1 // pred_check_branch
      %38 = sbr.rel (0) target = $region17
    $region16: #{tpu_custom_call.1} parent=1 // pred_region
      %s40 = ssub.s32 2048, 2048
      %41 = vsyncadd [#allocation6], %s40
      %s42 = sshll.u32 [#allocation7], 4
      %s43 = int_to_ptr.vmem [resolvable:$true] %s42
      %48 = dma.hbm_to_vmem [thread:$0]  %s3, 2048, %s43, [#allocation6], 64, 64, 4
    $region17: #{tpu_custom_call.1} parent=1 // pred_fallthru
      _
    // Predicated region
    $region18: #{tpu_custom_call.1} parent=1 // pred_check
      _
    $region19: #{tpu_custom_call.1} parent=1 // pred_check_branch
      %50 = sbr.rel (0) target = $region21
    $region20: #{tpu_custom_call.1} parent=1 // pred_region
      _
    $region21: #{tpu_custom_call.1} parent=1 // pred_fallthru
      _
    // Predicated region
    $region22: #{tpu_custom_call.1} parent=1 // pred_check
      _
    $region23: #{tpu_custom_call.1} parent=1 // pred_check_branch
      %52 = sbr.rel (0) target = $region25
    $region24: #{tpu_custom_call.1} parent=1 // pred_region
      %53 = dma.done [#allocation3], 128
    $region25: #{tpu_custom_call.1} parent=1 // pred_fallthru
      _
    // Predicated region
    $region26: #{tpu_custom_call.1} parent=1 // pred_check
      _
    $region27: #{tpu_custom_call.1} parent=1 // pred_check_branch
      %55 = sbr.rel (0) target = $region29
    $region28: #{tpu_custom_call.1} parent=1 // pred_region
      %56 = dma.done [#allocation6], 1024
    $region29: #{tpu_custom_call.1} parent=1 // pred_fallthru
      _
    // Predicated region
    $region30: #{tpu_custom_call.1} parent=1 // pred_check
      _
    $region31: #{tpu_custom_call.1} parent=1 // pred_check_branch
      %58 = sbr.rel (0) target = $region33
    $region32: #{tpu_custom_call.1} parent=1 // pred_region
      %59 = dma.done [#allocation6], 2048
    $region33: #{tpu_custom_call.1} parent=1 // pred_fallthru
      _
    %v61 = vld [vmem:[#allocation2] sm:$0xff]
    %v62 = vpack.c.bf16 %v61, %v61
    %v63 = vld [vmem:[#allocation5] sm:$0xff]
    %v64 = vld [vmem:[#allocation5 + $0x8] sm:$0xff]
    %v65 = vld [vmem:[#allocation5 + $0x10] sm:$0xff]
    %v66 = vld [vmem:[#allocation5 + $0x18] sm:$0xff]
    %v67 = vld [vmem:[#allocation5 + $0x20] sm:$0xff]
    %v68 = vld [vmem:[#allocation5 + $0x28] sm:$0xff]
    %v69 = vld [vmem:[#allocation5 + $0x30] sm:$0xff]
    %v70 = vld [vmem:[#allocation5 + $0x38] sm:$0xff]
    %v71 = vld [vmem:[%s2] sm:$0x3]
    %v73 = vlaneseq
    %v74 = vshrl.u32 %v73, 7
    %v75 = vsub.s32 0, %v74
    %v76 = vrot.slane %v71, %v75
    %v77 = vlaneseq
    %v78 = vshrl.u32 %v77, 7
    %v79 = vsub.s32 1, %v78
    %v80 = vrot.slane %v71, %v79
    %v91 = vunpack.c.l.b16 %v63
    %v92 = vunpack.c.h.b16 %v63
    %v93 = vunpack.c.l.b16 %v64
    %v94 = vunpack.c.h.b16 %v64
    %v95 = vunpack.c.l.b16 %v65
    %v96 = vunpack.c.h.b16 %v65
    %v97 = vunpack.c.l.b16 %v66
    %v98 = vunpack.c.h.b16 %v66
    %v99 = vunpack.c.l.b16 %v67
    %v100 = vunpack.c.h.b16 %v67
    %v101 = vunpack.c.l.b16 %v68
    %v102 = vunpack.c.h.b16 %v68
    %v103 = vunpack.c.l.b16 %v69
    %v104 = vunpack.c.h.b16 %v69
    %v105 = vunpack.c.l.b16 %v70
    %v106 = vunpack.c.h.b16 %v70
    %v107 = vpack.c.b16 %v93, %v91
    %v108 = vpack.c.b16 %v94, %v92
    %v109 = vpack.c.b16 %v97, %v95
    %v110 = vpack.c.b16 %v98, %v96
    %v111 = vpack.c.b16 %v101, %v99
    %v112 = vpack.c.b16 %v102, %v100
    %v113 = vpack.c.b16 %v105, %v103
    %v114 = vpack.c.b16 %v106, %v104
    %vm123 = vcmask 523264
    %v125 = vsel %vm123, %v62, 0
    %127 = vmatprep.subr.bf16.mxu0 %v108
    %128 = vmatpush1.bf16.msra.mxu0 %v107
    %129 = vmatprep.subr.bf16.mxu0 %v110
    %130 = vmatpush1.bf16.msra.mxu0 %v109
    %131 = vmatprep.subr.bf16.mxu0 %v112
    %132 = vmatpush1.bf16.msra.mxu0 %v111
    %133 = vmatprep.subr.bf16.mxu0 %v114
    %134 = vmatpush1.bf16.msra.mxu0 %v113
    %135 = vmatprep.subr.bf16.mxu0 0
    %136 = vmatpush1.bf16.msra.mxu0 0
    %137 = vmatprep.subr.bf16.mxu0 0
    %138 = vmatpush1.bf16.msra.mxu0 0
    %139 = vmatprep.subr.bf16.mxu0 0
    %140 = vmatpush1.bf16.msra.mxu0 0
    %141 = vmatprep.subr.bf16.mxu0 0
    %142 = vmatpush1.bf16.msra.mxu0 0
    %143 = vmatprep.subr.bf16.mxu0 0
    %144 = vmatpush1.bf16.msra.mxu0 0
    %145 = vmatprep.subr.bf16.mxu0 0
    %146 = vmatpush1.bf16.msra.mxu0 0
    %147 = vmatprep.subr.bf16.mxu0 0
    %148 = vmatpush1.bf16.msra.mxu0 0
    %149 = vmatprep.subr.bf16.mxu0 0
    %150 = vmatpush1.bf16.msra.mxu0 0
    %151 = vmatprep.subr.bf16.mxu0 0
    %152 = vmatpush1.bf16.msra.mxu0 0
    %153 = vmatprep.subr.bf16.mxu0 0
    %154 = vmatpush1.bf16.msra.mxu0 0
    %155 = vmatprep.subr.bf16.mxu0 0
    %156 = vmatpush1.bf16.msra.mxu0 0
    %157 = vmatprep.subr.bf16.mxu0 0
    %158 = vmatpush1.bf16.msra.mxu0 0
    %159 = vmatprep.mubr.bf16.mxu0 0
    %160 = vmatmul.mubr.bf16.gmra.mrb[0].mxu0 %v125
    %v161 = vpop.f32.mrb[0].mxu0
    %v162 = vadd.f32 %v76, %v161
    %v163 = vpop.f32.mrb[0].mxu0
    %v164 = vadd.f32 %v80, %v163
    %v165 = vpop.f32.mrb[0].mxu0
    %v166 = vpop.f32.mrb[0].mxu0
    %167 = vdwg.mxu0
    %v168 = vmax.f32 %v162, 0.0
    %v169 = vmax.f32 %v164, 0.0
    %v170 = vpack.c.bf16 %v168, %v168
    %v171 = vpack.c.bf16 %v169, %v169
    %v172 = vld [vmem:[#allocation7] sm:$0xf]
    %v173 = vld [vmem:[#allocation7 + $0x4] sm:$0xf]
    %v174 = vld [vmem:[#allocation7 + $0x8] sm:$0xf]
    %v175 = vld [vmem:[#allocation7 + $0xc] sm:$0xf]
    %v176 = vld [vmem:[#allocation7 + $0x10] sm:$0xf]
    %v177 = vld [vmem:[#allocation7 + $0x14] sm:$0xf]
    %v178 = vld [vmem:[#allocation7 + $0x18] sm:$0xf]
    %v179 = vld [vmem:[#allocation7 + $0x1c] sm:$0xf]
    %v180 = vld [vmem:[#allocation7 + $0x20] sm:$0xf]
    %v181 = vld [vmem:[#allocation7 + $0x24] sm:$0xf]
    %v182 = vld [vmem:[#allocation7 + $0x28] sm:$0xf]
    %v183 = vld [vmem:[#allocation7 + $0x2c] sm:$0xf]
    %v184 = vld [vmem:[#allocation7 + $0x30] sm:$0xf]
    %v185 = vld [vmem:[#allocation7 + $0x34] sm:$0xf]
    %v186 = vld [vmem:[#allocation7 + $0x38] sm:$0xf]
    %v187 = vld [vmem:[#allocation7 + $0x3c] sm:$0xf]
    %v188 = vld [vmem:[#allocation7 + $0x40] sm:$0xf]
    %v189 = vld [vmem:[#allocation7 + $0x44] sm:$0xf]
    %v190 = vld [vmem:[#allocation7 + $0x48] sm:$0xf]
    %v191 = vld [vmem:[#allocation7 + $0x4c] sm:$0xf]
    %v192 = vld [vmem:[#allocation7 + $0x50] sm:$0xf]
    %v193 = vld [vmem:[#allocation7 + $0x54] sm:$0xf]
    %v194 = vld [vmem:[#allocation7 + $0x58] sm:$0xf]
    %v195 = vld [vmem:[#allocation7 + $0x5c] sm:$0xf]
    %v196 = vld [vmem:[#allocation7 + $0x60] sm:$0xf]
    %v197 = vld [vmem:[#allocation7 + $0x64] sm:$0xf]
    %v198 = vld [vmem:[#allocation7 + $0x68] sm:$0xf]
    %v199 = vld [vmem:[#allocation7 + $0x6c] sm:$0xf]
    %v200 = vld [vmem:[#allocation7 + $0x70] sm:$0xf]
    %v201 = vld [vmem:[#allocation7 + $0x74] sm:$0xf]
    %v202 = vld [vmem:[#allocation7 + $0x78] sm:$0xf]
    %v203 = vld [vmem:[#allocation7 + $0x7c] sm:$0xf]
    %v204 = vld [vmem:[%s4] sm:$0x1]
    %v206 = vlaneseq
    %v207 = vshrl.u32 %v206, 7
    %v208 = vsub.s32 0, %v207
    %v209 = vrot.slane %v204, %v208
    %v243 = vunpack.c.l.b16 %v172
    %v244 = vunpack.c.l.b16 %v173
    %v245 = vunpack.c.l.b16 %v174
    %v246 = vunpack.c.l.b16 %v175
    %v247 = vunpack.c.l.b16 %v176
    %v248 = vunpack.c.l.b16 %v177
    %v249 = vunpack.c.l.b16 %v178
    %v250 = vunpack.c.l.b16 %v179
    %v251 = vunpack.c.l.b16 %v180
    %v252 = vunpack.c.l.b16 %v181
    %v253 = vunpack.c.l.b16 %v182
    %v254 = vunpack.c.l.b16 %v183
    %v255 = vunpack.c.l.b16 %v184
    %v256 = vunpack.c.l.b16 %v185
    %v257 = vunpack.c.l.b16 %v186
    %v258 = vunpack.c.l.b16 %v187
    %v259 = vunpack.c.l.b16 %v188
    %v260 = vunpack.c.l.b16 %v189
    %v261 = vunpack.c.l.b16 %v190
    %v262 = vunpack.c.l.b16 %v191
    %v263 = vunpack.c.l.b16 %v192
    %v264 = vunpack.c.l.b16 %v193
    %v265 = vunpack.c.l.b16 %v194
    %v266 = vunpack.c.l.b16 %v195
    %v267 = vunpack.c.l.b16 %v196
    %v268 = vunpack.c.l.b16 %v197
    %v269 = vunpack.c.l.b16 %v198
    %v270 = vunpack.c.l.b16 %v199
    %v271 = vunpack.c.l.b16 %v200
    %v272 = vunpack.c.l.b16 %v201
    %v273 = vunpack.c.l.b16 %v202
    %v274 = vunpack.c.l.b16 %v203
    %v275 = vpack.c.b16 %v244, %v243
    %v276 = vpack.c.b16 %v246, %v245
    %v277 = vpack.c.b16 %v248, %v247
    %v278 = vpack.c.b16 %v250, %v249
    %v279 = vpack.c.b16 %v252, %v251
    %v280 = vpack.c.b16 %v254, %v253
    %v281 = vpack.c.b16 %v256, %v255
    %v282 = vpack.c.b16 %v258, %v257
    %v283 = vpack.c.b16 %v260, %v259
    %v284 = vpack.c.b16 %v262, %v261
    %v285 = vpack.c.b16 %v264, %v263
    %v286 = vpack.c.b16 %v266, %v265
    %v287 = vpack.c.b16 %v268, %v267
    %v288 = vpack.c.b16 %v270, %v269
    %v289 = vpack.c.b16 %v272, %v271
    %v290 = vpack.c.b16 %v274, %v273
    %307 = vmatprep.subr.bf16.mxu0 0
    %308 = vmatpush1.bf16.msra.mxu0 %v275
    %309 = vmatprep.subr.bf16.mxu0 0
    %310 = vmatpush1.bf16.msra.mxu0 %v276
    %311 = vmatprep.subr.bf16.mxu0 0
    %312 = vmatpush1.bf16.msra.mxu0 %v277
    %313 = vmatprep.subr.bf16.mxu0 0
    %314 = vmatpush1.bf16.msra.mxu0 %v278
    %315 = vmatprep.subr.bf16.mxu0 0
    %316 = vmatpush1.bf16.msra.mxu0 %v279
    %317 = vmatprep.subr.bf16.mxu0 0
    %318 = vmatpush1.bf16.msra.mxu0 %v280
    %319 = vmatprep.subr.bf16.mxu0 0
    %320 = vmatpush1.bf16.msra.mxu0 %v281
    %321 = vmatprep.subr.bf16.mxu0 0
    %322 = vmatpush1.bf16.msra.mxu0 %v282
    %323 = vmatprep.subr.bf16.mxu0 0
    %324 = vmatpush1.bf16.msra.mxu0 %v283
    %325 = vmatprep.subr.bf16.mxu0 0
    %326 = vmatpush1.bf16.msra.mxu0 %v284
    %327 = vmatprep.subr.bf16.mxu0 0
    %328 = vmatpush1.bf16.msra.mxu0 %v285
    %329 = vmatprep.subr.bf16.mxu0 0
    %330 = vmatpush1.bf16.msra.mxu0 %v286
    %331 = vmatprep.subr.bf16.mxu0 0
    %332 = vmatpush1.bf16.msra.mxu0 %v287
    %333 = vmatprep.subr.bf16.mxu0 0
    %334 = vmatpush1.bf16.msra.mxu0 %v288
    %335 = vmatprep.subr.bf16.mxu0 0
    %336 = vmatpush1.bf16.msra.mxu0 %v289
    %337 = vmatprep.subr.bf16.mxu0 0
    %338 = vmatpush1.bf16.msra.mxu0 %v290
    %339 = vmatprep.mubr.bf16.mxu0 %v171
    %340 = vmatmul.mubr.bf16.gmra.mrb[0].mxu0 %v170
    %v341 = vpop.f32.mrb[0].mxu0
    %v342 = vadd.f32 %v209, %v341
    %v343 = vpop.f32.mrb[0].mxu0
    %v344 = vpop.f32.mrb[0].mxu0
    %v345 = vpop.f32.mrb[0].mxu0
    %346 = vdwg.mxu0
    %347 = vst [vmem:[#allocation8] sm:$0xff] %v342
    // Predicated region
    $region34: #{tpu_custom_call.1} parent=1 // pred_check
      _
    $region35: #{tpu_custom_call.1} parent=1 // pred_check_branch
      %349 = sbr.rel (0) target = $region37
    $region36: #{tpu_custom_call.1} parent=1 // pred_region
      %s351 = ssub.s32 128, 128
      %352 = vsyncadd [#allocation4], %s351
      %s354 = sshll.u32 [#allocation8], 4
      %s355 = int_to_ptr.vmem [resolvable:$true] %s354
      %357 = dma.vmem_to_hbm [thread:$0]  %s355, 128, %s5, [#allocation4]
    $region37: #{tpu_custom_call.1} parent=1 // pred_fallthru
      _
    // Predicated region
    $region38: #{tpu_custom_call.1} parent=1 // pred_check
      _
    $region39: #{tpu_custom_call.1} parent=1 // pred_check_branch
      %359 = sbr.rel (0) target = $region41
    $region40: #{tpu_custom_call.1} parent=1 // pred_region
      %360 = dma.done [#allocation4], 128
    $region41: #{tpu_custom_call.1} parent=1 // pred_fallthru
      _
    %361 = vsyncpa [#allocation3], 1
    %362 = vsyncpa [#allocation6], 1
    %363 = vsyncpa [#allocation4], 1

</llo_original>
